<compile_context>
chip_gen: v7x
topology: tpu7x:2x2x1
jax: 0.10.0
libtpu: 0.0.40
codegen_flags: <defaults>
</compile_context>

<pallas_src>
import jax
import jax.numpy as jnp
import numpy as np
from jax.experimental import pallas as pl
from jax.experimental.pallas import tpu as pltpu


def cnn1d_kernel(sig_ref, p_ref, s_ref, o_ref):
    # sig_ref: (8, 1) f32, rows 0..6 hold the 7-sample signal (row 7 = padding)
    # p_ref  : (16, 128) f32 packed parameter block
    #          rows 0..5, lanes 0:64 -> fc1 weight, transposed: f1wT[t, c] = fc1_w[0, c*6 + t]
    #          row 6,     lanes 0:64 -> conv weight tap 0  (w[c, 0])
    #          row 7,     lanes 0:64 -> conv weight tap 1  (w[c, 1])
    #          row 8,     lanes 0:64 -> conv bias
    # s_ref  : (3,) f32 in SMEM: [fc1_b, fc2_w, fc2_b]
    # o_ref  : (1, 1) f32
    x0 = sig_ref[0:6, :]          # (6, 1)  x[t]
    x1 = sig_ref[1:7, :]          # (6, 1)  x[t+1]

    f1w = p_ref[0:6, 0:64]        # (6, 64)
    cw0 = p_ref[6:7, 0:64]        # (1, 64)
    cw1 = p_ref[7:8, 0:64]        # (1, 64)
    cb = p_ref[8:9, 0:64]         # (1, 64)

    # Conv1d(1 -> 64, k=2) + ReLU, channels on lanes, time on sublanes.
    conv = jnp.maximum(x0 * cw0 + x1 * cw1 + cb, 0.0)      # (6, 64)

    # fc1: Linear(64*6 -> 1) as elementwise mul + full reduce, then ReLU.
    h = jnp.sum(f1w * conv, keepdims=True) + s_ref[0]      # (1, 1)
    h = jnp.maximum(h, 0.0)

    # fc2: Linear(1 -> 1)
    o_ref[...] = s_ref[1] * h + s_ref[2]


def prepare_params(params):
    """One-time packing of model parameters (hoisted out of the per-call path)."""
    conv_w, conv_b, fc1_w, fc1_b, fc2_w, fc2_b = params
    cw = jnp.reshape(conv_w, (64, 2)).astype(jnp.float32)
    cb = jnp.reshape(conv_b, (64,)).astype(jnp.float32)
    # PyTorch flattens the (1, 64, 6) conv output channel-major, so
    # fc1_w[0, c*6 + t] multiplies conv[c, t]; transpose to (6, 64).
    f1wT = jnp.transpose(jnp.reshape(fc1_w, (64, 6)).astype(jnp.float32))   # (6, 64)

    packed = jnp.zeros((16, 128), jnp.float32)
    packed = packed.at[0:6, 0:64].set(f1wT)
    packed = packed.at[6, 0:64].set(cw[:, 0])
    packed = packed.at[7, 0:64].set(cw[:, 1])
    packed = packed.at[8, 0:64].set(cb)

    scalars = jnp.stack([jnp.reshape(fc1_b, ()),
                         jnp.reshape(fc2_w, ()),
                         jnp.reshape(fc2_b, ())]).astype(jnp.float32)        # (3,)
    return packed, scalars


def model_forward(x, packed, scalars):
    """x: (B, 7, 1) float32; mirrors Model.forward (only x[0] is used)."""
    # Per-call glue: only the signal reshape/pad (weights are pre-packed).
    sig = jnp.reshape(x[0], (-1,)).astype(jnp.float32)       # (7,)
    sig_col = jnp.pad(sig, (0, 1)).reshape(8, 1)             # (8, 1), sublane axis = time

    out = pl.pallas_call(
        cnn1d_kernel,
        out_shape=jax.ShapeDtypeStruct((1, 1), jnp.float32),
        in_specs=[
            pl.BlockSpec(memory_space=pltpu.MemorySpace.VMEM),   # signal
            pl.BlockSpec(memory_space=pltpu.MemorySpace.VMEM),   # packed params
            pl.BlockSpec(memory_space=pltpu.MemorySpace.SMEM),   # [fc1_b, fc2_w, fc2_b]
        ],
        out_specs=pl.BlockSpec(memory_space=pltpu.MemorySpace.VMEM),
    )(sig_col, packed, scalars)
    return out.reshape(-1)                                    # (1,)


def reference_forward(x, params):
    """Pure-JAX reference matching the PyTorch semantics."""
    conv_w, conv_b, fc1_w, fc1_b, fc2_w, fc2_b = params
    sig = jnp.reshape(x[0], (-1,)).astype(jnp.float32)       # (7,)
    cols = jnp.stack([sig[0:6], sig[1:7]], axis=0)           # (2, 6)
    conv = conv_w.reshape(64, 2) @ cols + conv_b[:, None]    # (64, 6)
    conv = jnp.maximum(conv, 0.0)
    flat = conv.reshape(-1)                                  # (384,) channel-major
    h = jnp.maximum(fc1_w.reshape(-1) @ flat + fc1_b[0], 0.0)
    return (fc2_w.reshape(()) * h + fc2_b[0]).reshape(1)


if __name__ == "__main__":
    key = jax.random.PRNGKey(0)
    k1, k2, k3, k4, k5, k6, kx = jax.random.split(key, 7)

    # Deterministic synthetic parameters (shapes from Model.__init__).
    conv_w = jax.random.normal(k1, (64, 1, 2), jnp.float32) * 0.5   # Conv1d(1, 64, k=2)
    conv_b = jax.random.normal(k2, (64,), jnp.float32) * 0.1
    fc1_w = jax.random.normal(k3, (1, 384), jnp.float32) * 0.05     # Linear(64*6, 1)
    fc1_b = jax.random.normal(k4, (1,), jnp.float32) * 0.1
    fc2_w = jax.random.normal(k5, (1, 1), jnp.float32)              # Linear(1, 1)
    fc2_b = jax.random.normal(k6, (1,), jnp.float32)
    params = (conv_w, conv_b, fc1_w, fc1_b, fc2_w, fc2_b)

    # Input: forward uses x[0] only; needs 7 elements per sample -> (B=2, 7, 1).
    x = jax.random.normal(kx, (2, 7, 1), jnp.float32)

    # One-time parameter packing, then the (jitted) per-call forward.
    packed, scalars = prepare_params(params)
    fwd = jax.jit(model_forward)

    out = jax.block_until_ready(fwd(x, packed, scalars))
    ref = jax.block_until_ready(reference_forward(x, params))

    assert out.shape == (1,), out.shape
    assert np.allclose(np.asarray(out), np.asarray(ref), rtol=1e-5, atol=1e-5), (out, ref)
    print("KERNEL_OK")
</pallas_src>

<mosaic_0001>
module attributes {stable_mosaic.version = 11 : i64} {
  func.func @cnn1d_kernel(%arg0: memref<8x1xf32, #tpu.memory_space<vmem>>, %arg1: memref<16x128xf32, #tpu.memory_space<vmem>>, %arg2: memref<3xf32, #tpu.memory_space<smem>>, %arg3: memref<1x1xf32, #tpu.memory_space<vmem>>) attributes {dimension_semantics = [], scalar_prefetch = 0 : i64, scratch_operands = 0 : i64, tpu.core_type = #tpu.core_type<tc>} {
    %c0 = arith.constant 0 : index
    %c0_0 = arith.constant 0 : index
    %0 = vector.load %arg0[%c0, %c0_0] : memref<8x1xf32, #tpu.memory_space<vmem>>, vector<6x1xf32>
    %c1 = arith.constant 1 : index
    %c0_1 = arith.constant 0 : index
    %1 = vector.load %arg0[%c1, %c0_1] : memref<8x1xf32, #tpu.memory_space<vmem>>, vector<6x1xf32>
    %c0_2 = arith.constant 0 : index
    %c0_3 = arith.constant 0 : index
    %2 = vector.load %arg1[%c0_2, %c0_3] : memref<16x128xf32, #tpu.memory_space<vmem>>, vector<6x64xf32>
    %c6 = arith.constant 6 : index
    %c0_4 = arith.constant 0 : index
    %3 = vector.load %arg1[%c6, %c0_4] : memref<16x128xf32, #tpu.memory_space<vmem>>, vector<1x64xf32>
    %c7 = arith.constant 7 : index
    %c0_5 = arith.constant 0 : index
    %4 = vector.load %arg1[%c7, %c0_5] : memref<16x128xf32, #tpu.memory_space<vmem>>, vector<1x64xf32>
    %c8 = arith.constant 8 : index
    %c0_6 = arith.constant 0 : index
    %5 = vector.load %arg1[%c8, %c0_6] : memref<16x128xf32, #tpu.memory_space<vmem>>, vector<1x64xf32>
    %6 = vector.broadcast %0 : vector<6x1xf32> to vector<6x64xf32>
    %7 = vector.broadcast %3 : vector<1x64xf32> to vector<6x64xf32>
    %8 = arith.mulf %6, %7 : vector<6x64xf32>
    %9 = vector.broadcast %1 : vector<6x1xf32> to vector<6x64xf32>
    %10 = vector.broadcast %4 : vector<1x64xf32> to vector<6x64xf32>
    %11 = arith.mulf %9, %10 : vector<6x64xf32>
    %12 = arith.addf %8, %11 : vector<6x64xf32>
    %13 = vector.broadcast %5 : vector<1x64xf32> to vector<6x64xf32>
    %14 = arith.addf %12, %13 : vector<6x64xf32>
    %cst = arith.constant 0.000000e+00 : f32
    %15 = vector.broadcast %cst : f32 to vector<6x64xf32>
    %16 = arith.maximumf %14, %15 : vector<6x64xf32>
    %17 = arith.mulf %2, %16 : vector<6x64xf32>
    %18 = vector.shape_cast %17 : vector<6x64xf32> to vector<1x6x64xf32>
    %cst_7 = arith.constant dense<0.000000e+00> : vector<1xf32>
    %19 = vector.multi_reduction <add>, %18, %cst_7 [1, 2] : vector<1x6x64xf32> to vector<1xf32>
    %20 = vector.shape_cast %19 : vector<1xf32> to vector<1x1x1xf32>
    %21 = vector.extract %20[0, 0, 0] : f32 from vector<1x1x1xf32>
    %22 = vector.broadcast %21 : f32 to vector<1x1xf32>
    %c0_8 = arith.constant 0 : index
    %23 = memref.load %arg2[%c0_8] : memref<3xf32, #tpu.memory_space<smem>>
    %24 = vector.broadcast %23 : f32 to vector<1x1xf32>
    %25 = arith.addf %22, %24 : vector<1x1xf32>
    %cst_9 = arith.constant 0.000000e+00 : f32
    %26 = vector.broadcast %cst_9 : f32 to vector<1x1xf32>
    %27 = arith.maximumf %25, %26 : vector<1x1xf32>
    %c1_10 = arith.constant 1 : index
    %28 = memref.load %arg2[%c1_10] : memref<3xf32, #tpu.memory_space<smem>>
    %29 = vector.broadcast %28 : f32 to vector<1x1xf32>
    %30 = arith.mulf %29, %27 : vector<1x1xf32>
    %c2 = arith.constant 2 : index
    %31 = memref.load %arg2[%c2] : memref<3xf32, #tpu.memory_space<smem>>
    %32 = vector.broadcast %31 : f32 to vector<1x1xf32>
    %33 = arith.addf %30, %32 : vector<1x1xf32>
    %c0_11 = arith.constant 0 : index
    %c0_12 = arith.constant 0 : index
    %34 = vector.load %arg3[%c0_11, %c0_12] : memref<1x1xf32, #tpu.memory_space<vmem>>, vector<1x1xf32>
    tpu.vector_store %arg3[%c0_11, %c0_12], %33 {strides = array<i32>} : memref<1x1xf32, #tpu.memory_space<vmem>>, vector<1x1xf32>,
    return
  }
}

</mosaic_0001>

<llo_original>
// kernel: model_forward.1
$region0: #{model_forward.1}
  #allocation0 [shape = 'u32[]', space=smem, size = 0x4, offset = 0x4, fixed_abs, tag = 'smem constant byte address 0x4 - core index']
  #allocation1 [shape = 'u32[144,128]{1,0:T(1,128)}', space=vmem, size = 0x12000, scoped, tag = 'internal scratch']
  %s0 = inlined_call_operand.vmem [shape: f32[8,1], index: 0, kind: input, shape index: {}]
  %s1 = inlined_call_operand.vmem [shape: f32[16,128], index: 1, kind: input, shape index: {}]
  %s2 = inlined_call_operand.vmem [shape: f32[3], index: 2, kind: input, shape index: {}]
  %s3 = inlined_call_operand.hbm [shape: f32[1,1], index: 3, kind: output, shape index: {}]
  %s4 = sld [smem:[#allocation0]]
  $region26: #{model_forward.1} parent=0
    _
  %s6 = ssub.s32 1, %s4
  %s7 = scalar_select 0, %s6, %s4
  $region1: #{model_forward.1} parent=0
    #allocation2 [shape = 'u8[512]{0}', space=smem, size = 0x200, scoped, tag = 'input window, operand 2, single buffered']
    #allocation3 [shape = 's32[1]{0}', space=sflag, size = 0x4, scoped, tag = 'scoped memory for model_forward.1']
    #allocation4 [shape = 's32[1]{0}', space=sflag, size = 0x4, scoped, tag = 'scoped memory for model_forward.1']
    #allocation5 [shape = 'u8[512]{0}', space=vmem, size = 0x400, scoped, tag = 'output window, operand 0, single buffered']
    %8 = vsyncpa [#allocation4], 0
    %9 = vsyncpa [#allocation3], 0
    // Predicated region
    $region2: #{model_forward.1} parent=1 // pred_check
      _
    $region3: #{model_forward.1} parent=1 // pred_check_branch
      %11 = sbr.rel (0) target = $region5
    $region4: #{model_forward.1} parent=1 // pred_region
      _
    $region5: #{model_forward.1} parent=1 // pred_fallthru
      _
    // Predicated region
    $region6: #{model_forward.1} parent=1 // pred_check
      _
    $region7: #{model_forward.1} parent=1 // pred_check_branch
      %13 = sbr.rel (0) target = $region9
    $region8: #{model_forward.1} parent=1 // pred_region
      _
    $region9: #{model_forward.1} parent=1 // pred_fallthru
      _
    // Predicated region
    $region10: #{model_forward.1} parent=1 // pred_check
      _
    $region11: #{model_forward.1} parent=1 // pred_check_branch
      %15 = sbr.rel (0) target = $region13
    $region12: #{model_forward.1} parent=1 // pred_region
      %s17 = ssub.s32 16, 16
      %18 = vsyncadd [#allocation4], %s17
      %s20 = sshll.u32 %s2, 4
      %s21 = int_to_ptr.vmem [resolvable:$true] %s20
      %23 = dma.vmem_to_smem %s21, 16, [#allocation2], [#allocation4]
    $region13: #{model_forward.1} parent=1 // pred_fallthru
      _
    // Predicated region
    $region14: #{model_forward.1} parent=1 // pred_check
      _
    $region15: #{model_forward.1} parent=1 // pred_check_branch
      %25 = sbr.rel (0) target = $region17
    $region16: #{model_forward.1} parent=1 // pred_region
      %26 = dma.done [#allocation4], 16
    $region17: #{model_forward.1} parent=1 // pred_fallthru
      _
    %27 = sfence
    %v28 = vld [vmem:[%s0] sm:$0x3f]
    %v29 = vld [vmem:[%s0 + $0x1] sm:$0x3f]
    %v30 = vld [vmem:[%s1] sm:$0x3f]
    %v31 = vld [vmem:[%s1 + $0x6] sm:$0x1]
    %v32 = vld [vmem:[%s1 + $0x7] sm:$0x1]
    %v33 = vld [vmem:[%s1 + $0x8] sm:$0x1]
    %35 = vset.pattern.permute.xlu0 0
    %36 = vperm.xlu0 %35, %v28
    %v37 = vpop.permute.xlu0 %36
    %v39 = vlaneseq
    %v40 = vshrl.u32 %v39, 7
    %v41 = vsub.s32 0, %v40
    %v42 = vrot.slane %v31, %v41
    %v43 = vmul.f32 %v37, %v42
    %45 = vset.pattern.permute.xlu0 0
    %46 = vperm.xlu0 %45, %v29
    %v47 = vpop.permute.xlu0 %46
    %v49 = vlaneseq
    %v50 = vshrl.u32 %v49, 7
    %v51 = vsub.s32 0, %v50
    %v52 = vrot.slane %v32, %v51
    %v53 = vmul.f32 %v47, %v52
    %v54 = vadd.f32 %v43, %v53
    %v55 = vlaneseq
    %v56 = vshrl.u32 %v55, 7
    %v57 = vsub.s32 0, %v56
    %v58 = vrot.slane %v33, %v57
    %v59 = vadd.f32 %v54, %v58
    %v60 = vmax.f32 %v59, 0.0
    %v61 = vmul.f32 %v30, %v60
    %vm62 = vcmask 521216
    %v63 = vsel %vm62, %v61, 0.0
    %64 = vadd.xlane.f32.xlu0 %v63
    %v65 = vpop.xlane.xlu0 %64
    %v66 = vrot.slane %v65, 4
    %v67 = vadd.f32 %v65, %v66
    %v68 = vrot.slane %v67, 2
    %v69 = vadd.f32 %v67, %v68
    %v70 = vrot.slane %v69, 1
    %v71 = vadd.f32 %v69, %v70
    %s72 = vtos %v71
    %v73 = vstv %s72
    %s74 = sld [smem:[#allocation2]]
    %v75 = vstv %s74
    %v76 = vadd.f32 %v73, %v75
    %v77 = vmax.f32 %v76, 0.0
    %s78 = sld [smem:[#allocation2 + $0x1]]
    %v79 = vstv %s78
    %v80 = vmul.f32 %v79, %v77
    %s81 = sld [smem:[#allocation2 + $0x2]]
    %v82 = vstv %s81
    %v83 = vadd.f32 %v80, %v82
    %vm84 = vcmask 0
    %85 = vst.msk [vmem:[#allocation5] sm:$0x1] %vm84, %v83
    // Predicated region
    $region18: #{model_forward.1} parent=1 // pred_check
      _
    $region19: #{model_forward.1} parent=1 // pred_check_branch
      %87 = sbr.rel (0) target = $region21
    $region20: #{model_forward.1} parent=1 // pred_region
      %s89 = ssub.s32 16, 16
      %90 = vsyncadd [#allocation3], %s89
      %s92 = sshll.u32 [#allocation5], 4
      %s93 = int_to_ptr.vmem [resolvable:$true] %s92
      %95 = dma.vmem_to_hbm [thread:$0]  %s93, 16, %s3, [#allocation3]
    $region21: #{model_forward.1} parent=1 // pred_fallthru
      _
    // Predicated region
    $region22: #{model_forward.1} parent=1 // pred_check
      _
    $region23: #{model_forward.1} parent=1 // pred_check_branch
      %97 = sbr.rel (0) target = $region25
    $region24: #{model_forward.1} parent=1 // pred_region
      %98 = dma.done [#allocation3], 16
    $region25: #{model_forward.1} parent=1 // pred_fallthru
      _
    %99 = vsyncpa [#allocation3], 1
    %100 = vsyncpa [#allocation4], 1

</llo_original>
